<compile_context>
chip_gen: v7x
topology: tpu7x:2x2x1
jax: 0.10.0
libtpu: 0.0.40
codegen_flags: <defaults>
</compile_context>

<pallas_src>
import functools

import jax
import jax.numpy as jnp
from jax.experimental import pallas as pl
from jax.experimental.pallas import tpu as pltpu


def _round_up(a, m):
    return (a + m - 1) // m * m


def _vmem_capacity_bytes():
    """Physical VMEM of the local TPU (fallback: v7x-conservative 64 MiB)."""
    try:
        return int(pltpu.get_tpu_info().vmem_capacity_bytes)
    except Exception:
        return 64 << 20


def _largest_divisor_leq(n, cap):
    """Largest divisor of n that is <= cap (always >= 1)."""
    cap = max(1, min(cap, n))
    for d in range(cap, 0, -1):
        if n % d == 0:
            return d
    return 1


def _largest_mult8_divisor_leq(n, cap):
    """Largest divisor of n that is a multiple of 8 and <= cap, or None."""
    d = min(cap, n) // 8 * 8
    while d >= 8:
        if n % d == 0:
            return d
        d -= 8
    return None


# ----------------------------------------------------------------------------
# Fused single-pass kernel (auto-pipelined): pool + MLP + sigmoid + rescale.
# ----------------------------------------------------------------------------
def _fused_kernel(x_ref, w1_ref, w2_ref, o_ref, *, inv_hw):
    # x_ref: (1, C, HW) block for one batch element; channels on sublanes.
    # Pool with f32 accumulation WITHOUT materializing an f32 copy of the slab.
    y = jnp.sum(x_ref[0], axis=-1, keepdims=True, dtype=jnp.float32) * inv_hw  # (C, 1)
    w1 = w1_ref[...].astype(jnp.float32)                                       # (inner, C)
    w2 = w2_ref[...].astype(jnp.float32)                                       # (C, inner)
    h = jnp.maximum(jnp.dot(w1, y, preferred_element_type=jnp.float32), 0.0)   # (inner, 1)
    g = jax.nn.sigmoid(jnp.dot(w2, h, preferred_element_type=jnp.float32))     # (C, 1)
    # Rescale in the input's native dtype (bf16 VALU on v6e/v7x), gate broadcast
    # over the HW lanes; re-read the block instead of reusing an upcast copy.
    o_ref[0] = (x_ref[0] * g.astype(x_ref.dtype)).astype(o_ref.dtype)


def _fused_call(x_flat, w1, w2, hw_true, *, vmem_limit):
    B, C, HW = x_flat.shape
    inner = w1.shape[0]
    item = x_flat.dtype.itemsize
    kernel = functools.partial(_fused_kernel, inv_hw=1.0 / hw_true)
    return pl.pallas_call(
        kernel,
        out_shape=jax.ShapeDtypeStruct((B, C, HW), x_flat.dtype),
        grid_spec=pltpu.PrefetchScalarGridSpec(
            num_scalar_prefetch=0,
            grid=(B,),
            in_specs=[
                # Block == full array dims on the last two axes, so no (8,128)
                # divisibility requirement and no padding needed.
                pl.BlockSpec((1, C, HW), lambda b: (b, 0, 0)),
                pl.BlockSpec((inner, C), lambda b: (0, 0)),
                pl.BlockSpec((C, inner), lambda b: (0, 0)),
            ],
            out_specs=pl.BlockSpec((1, C, HW), lambda b: (b, 0, 0)),
        ),
        compiler_params=pltpu.CompilerParams(
            dimension_semantics=("parallel",),
            vmem_limit_bytes=vmem_limit,
        ),
        cost_estimate=pl.CostEstimate(
            flops=2 * B * C * HW + 4 * B * C * inner,
            transcendentals=B * C,
            bytes_accessed=2 * B * C * HW * item
            + (w1.size + w2.size) * w1.dtype.itemsize,
        ),
    )(x_flat, w1, w2)


# ----------------------------------------------------------------------------
# Fused single-slab kernel (manual DMA, 1x slab VMEM footprint).
# Used when the double-buffered fused block would not fit (e.g. v7x, 64 MiB).
# ----------------------------------------------------------------------------
def _fused_slab_kernel(x_hbm, w1_ref, w2_ref, o_hbm, slab, sem, *, inv_hw):
    b = pl.program_id(0)
    cp_in = pltpu.make_async_copy(x_hbm.at[b], slab, sem)
    cp_in.start()
    cp_in.wait()
    y = jnp.sum(slab[...], axis=-1, keepdims=True, dtype=jnp.float32) * inv_hw  # (C, 1)
    w1 = w1_ref[...].astype(jnp.float32)
    w2 = w2_ref[...].astype(jnp.float32)
    h = jnp.maximum(jnp.dot(w1, y, preferred_element_type=jnp.float32), 0.0)
    g = jax.nn.sigmoid(jnp.dot(w2, h, preferred_element_type=jnp.float32))
    slab[...] = slab[...] * g.astype(slab.dtype)        # rescale in place
    cp_out = pltpu.make_async_copy(slab, o_hbm.at[b], sem)
    cp_out.start()
    cp_out.wait()


def _fused_slab_call(x_flat, w1, w2, hw_true, *, vmem_limit):
    B, C, HW = x_flat.shape
    inner = w1.shape[0]
    item = x_flat.dtype.itemsize
    kernel = functools.partial(_fused_slab_kernel, inv_hw=1.0 / hw_true)
    return pl.pallas_call(
        kernel,
        out_shape=jax.ShapeDtypeStruct((B, C, HW), x_flat.dtype),
        grid_spec=pltpu.PrefetchScalarGridSpec(
            num_scalar_prefetch=0,
            grid=(B,),
            in_specs=[
                pl.BlockSpec(memory_space=pl.ANY),       # x stays in HBM; manual DMA
                pl.BlockSpec((inner, C), lambda b: (0, 0)),
                pl.BlockSpec((C, inner), lambda b: (0, 0)),
            ],
            out_specs=pl.BlockSpec(memory_space=pl.ANY),  # written via manual DMA
            scratch_shapes=[
                pltpu.VMEM((C, HW), x_flat.dtype),
                pltpu.SemaphoreType.DMA(()),
            ],
        ),
        compiler_params=pltpu.CompilerParams(
            dimension_semantics=("parallel",),
            vmem_limit_bytes=vmem_limit,
        ),
        cost_estimate=pl.CostEstimate(
            flops=2 * B * C * HW + 4 * B * C * inner,
            transcendentals=B * C,
            bytes_accessed=2 * B * C * HW * item
            + (w1.size + w2.size) * w1.dtype.itemsize,
        ),
    )(x_flat, w1, w2)


# ----------------------------------------------------------------------------
# Two-pass fallback: streaming pooling, tiny MLP outside, streaming rescale.
# ----------------------------------------------------------------------------
def _pool_kernel(x_ref, s_ref):
    @pl.when(pl.program_id(2) == 0)
    def _():
        s_ref[...] = jnp.zeros_like(s_ref)

    # f32 partial sums; no upcast copy of the tile is materialized.
    s_ref[0] = s_ref[0] + jnp.sum(x_ref[0], axis=-1, keepdims=True, dtype=jnp.float32)


def _rescale_kernel(g_ref, x_ref, o_ref):
    o_ref[0] = (x_ref[0] * g_ref[0].astype(x_ref.dtype)).astype(o_ref.dtype)


def _two_pass_call(x_flat, w1, w2, hw_true, vmem_cap):
    B, C, HW = x_flat.shape
    item = x_flat.dtype.itemsize
    budget = min(32 << 20, vmem_cap // 3)

    # Pad HW only to a multiple of 128 (lane width).  Tiles are chosen to
    # divide the padded extent exactly, so no near-full-tile padding and no
    # ragged tail is ever read or written.
    hw_pad = _round_up(HW, 128)
    n128 = hw_pad // 128

    # Channel tile: full C unless even a single 128-lane tile would blow the
    # budget (very wide C); then tile channels with a multiple-of-8 divisor.
    c_t = C
    if 4 * C * 128 * item > budget:
        max_ct = max(8, budget // (4 * 128 * item))
        c_t = _largest_mult8_divisor_leq(C, max_ct) or C
    n_c = C // c_t

    # HW tile: largest multiple of 128 that divides hw_pad and fits the budget
    # (in + out, double-buffered).
    max_d = max(1, budget // (4 * c_t * 128 * item))
    d = _largest_divisor_leq(n128, max_d)
    t_hw = d * 128
    n_t = n128 // d

    if hw_pad != HW:
        x_flat = jnp.pad(x_flat, ((0, 0), (0, 0), (0, hw_pad - HW)))

    tile_bytes = c_t * t_hw * item
    vlimit = min(int(0.9 * vmem_cap), max(4 * tile_bytes + (8 << 20), 16 << 20))

    # Pass 1: pooled sums per (batch, channel).  Padded lanes are zero, so the
    # true-HW mean (applied below) is unaffected.
    sums = pl.pallas_call(
        _pool_kernel,
        out_shape=jax.ShapeDtypeStruct((B, C, 1), jnp.float32),
        grid_spec=pltpu.PrefetchScalarGridSpec(
            num_scalar_prefetch=0,
            grid=(B, n_c, n_t),
            in_specs=[pl.BlockSpec((1, c_t, t_hw), lambda b, c, t: (b, c, t))],
            out_specs=pl.BlockSpec((1, c_t, 1), lambda b, c, t: (b, c, 0)),
        ),
        compiler_params=pltpu.CompilerParams(
            dimension_semantics=("parallel", "parallel", "arbitrary"),
            vmem_limit_bytes=vlimit,
        ),
        cost_estimate=pl.CostEstimate(
            flops=B * C * hw_pad,
            transcendentals=0,
            bytes_accessed=B * C * hw_pad * item,
        ),
    )(x_flat)

    # Tiny gate MLP as ONE batched matmul outside the streaming kernels.
    y = sums[:, :, 0] * (1.0 / hw_true)                                  # (B, C)
    h = jnp.maximum(y @ w1.astype(jnp.float32).T, 0.0)                   # (B, inner)
    gates = jax.nn.sigmoid(h @ w2.astype(jnp.float32).T)[:, :, None]     # (B, C, 1)

    # Pass 2: lane-dense tiled rescale; all axes independent => all parallel.
    out = pl.pallas_call(
        _rescale_kernel,
        out_shape=jax.ShapeDtypeStruct((B, C, hw_pad), x_flat.dtype),
        grid_spec=pltpu.PrefetchScalarGridSpec(
            num_scalar_prefetch=0,
            grid=(B, n_c, n_t),
            in_specs=[
                pl.BlockSpec((1, c_t, 1), lambda b, c, t: (b, c, 0)),
                pl.BlockSpec((1, c_t, t_hw), lambda b, c, t: (b, c, t)),
            ],
            out_specs=pl.BlockSpec((1, c_t, t_hw), lambda b, c, t: (b, c, t)),
        ),
        compiler_params=pltpu.CompilerParams(
            dimension_semantics=("parallel", "parallel", "parallel"),
            vmem_limit_bytes=vlimit,
        ),
        cost_estimate=pl.CostEstimate(
            flops=B * C * hw_pad,
            transcendentals=0,
            bytes_accessed=2 * B * C * hw_pad * item,
        ),
    )(gates, x_flat)

    if hw_pad != HW:
        out = out[:, :, :HW]
    return out


# ----------------------------------------------------------------------------
# Wrapper: generation-aware VMEM sizing and path selection.
# ----------------------------------------------------------------------------
def channel_attention(x, w1, w2, *, force_path=None):
    """SE-block forward.

    x: (B, C, H, W); w1: (inner, C); w2: (C, inner)  (torch nn.Linear layouts).
    force_path: None (auto), "fused", "fused_slab", or "two_pass".
    """
    B, C, H, W = x.shape
    HW = H * W
    item = x.dtype.itemsize
    x_flat = x.reshape(B, C, HW)

    vmem_cap = _vmem_capacity_bytes()
    fused_budget = int(vmem_cap * 0.75)        # ~96 MiB on v5e/v6e, ~48 MiB on v7x
    two_tensorcores = vmem_cap < (100 << 20)   # v7x-class part (64 MiB/TC, 2 TCs)

    # In-VMEM footprint of one (C, HW) slab, including (8, 128) tile padding.
    slab_bytes = _round_up(C, 8) * _round_up(HW, 128) * item
    w_item = w1.dtype.itemsize
    w_bytes = (_round_up(w1.shape[0], 8) * _round_up(w1.shape[1], 128)
               + _round_up(w2.shape[0], 8) * _round_up(w2.shape[1], 128)) * w_item
    fused_db_bytes = 4 * slab_bytes + 2 * w_bytes + (1 << 20)   # double-buffered in+out
    fused_slab_bytes = slab_bytes + 2 * w_bytes + (1 << 20)     # single manual-DMA slab

    if force_path is not None:
        path = force_path
    elif two_tensorcores and B == 1 and HW >= 256:
        # grid=(1,) would leave one v7x TensorCore idle; the tiled two-pass
        # rescale shards HW tiles across both cores.
        path = "two_pass"
    elif fused_db_bytes <= fused_budget:
        path = "fused"
    elif fused_slab_bytes <= fused_budget:
        path = "fused_slab"
    else:
        path = "two_pass"

    if path == "fused":
        vlimit = min(int(0.95 * vmem_cap), max(fused_db_bytes + (4 << 20), 16 << 20))
        out_flat = _fused_call(x_flat, w1, w2, HW, vmem_limit=vlimit)
    elif path == "fused_slab":
        vlimit = min(int(0.95 * vmem_cap), max(fused_slab_bytes + (4 << 20), 16 << 20))
        out_flat = _fused_slab_call(x_flat, w1, w2, HW, vmem_limit=vlimit)
    elif path == "two_pass":
        out_flat = _two_pass_call(x_flat, w1, w2, HW, vmem_cap)
    else:
        raise ValueError(f"unknown force_path {force_path!r}")

    return out_flat.reshape(B, C, H, W)


# ----------------------------------------------------------------------------
# Pure-JAX reference of the PyTorch forward + self-test.
# ----------------------------------------------------------------------------
def _reference(x, w1, w2):
    y = jnp.mean(x.astype(jnp.float32), axis=(2, 3))                 # (B, C)
    h = jnp.maximum(y @ w1.astype(jnp.float32).T, 0.0)               # (B, inner)
    s = jax.nn.sigmoid(h @ w2.astype(jnp.float32).T)                 # (B, C)
    return (x.astype(jnp.float32) * s[:, :, None, None]).astype(x.dtype)


def _check(x, w1, w2, force_path, label):
    out = jax.block_until_ready(channel_attention(x, w1, w2, force_path=force_path))
    ref = _reference(x, w1, w2)
    assert out.shape == x.shape and out.dtype == x.dtype, f"{label}: bad shape/dtype"
    assert jnp.allclose(out, ref, atol=1e-5, rtol=1e-5), f"{label}: value mismatch"


if __name__ == "__main__":
    key = jax.random.PRNGKey(0)

    # Case 1: lane-aligned spatial extent (HW = 256), module defaults.
    B, C, H, W, reduction = 2, 4, 16, 16, 4
    inner = max(1, C // reduction)                     # = 1
    kx, k1, k2, key = jax.random.split(key, 4)
    x = jax.random.normal(kx, (B, C, H, W), dtype=jnp.float32)
    # torch nn.Linear weight layouts: (out_features, in_features)
    w1 = jax.random.normal(k1, (inner, C), dtype=jnp.float32) * 0.5
    w2 = jax.random.normal(k2, (C, inner), dtype=jnp.float32) * 0.5
    _check(x, w1, w2, None, "fused auto")              # default fused path
    _check(x, w1, w2, "fused_slab", "fused single-slab (manual DMA)")
    _check(x, w1, w2, "two_pass", "two-pass fallback")

    # Case 2: HW = 49 (not a multiple of 128): fused path runs UNPADDED with
    # masked tail stores; two-pass path pads only to one 128-lane tile.
    B2, C2, H2, W2 = 2, 8, 7, 7
    inner2 = C2 // 4
    kx, k1, k2, key = jax.random.split(key, 4)
    x2 = jax.random.normal(kx, (B2, C2, H2, W2), dtype=jnp.float32)
    w1b = jax.random.normal(k1, (inner2, C2), dtype=jnp.float32) * 0.5
    w2b = jax.random.normal(k2, (C2, inner2), dtype=jnp.float32) * 0.5
    _check(x2, w1b, w2b, None, "fused auto (HW=49)")
    _check(x2, w1b, w2b, "two_pass", "two-pass (HW=49)")

    print("KERNEL_OK")
</pallas_src>

<mosaic_0001>
module attributes {stable_mosaic.version = 11 : i64} {
  func.func @_fused_kernel(%arg0: i32, %arg1: memref<1x4x256xf32, #tpu.memory_space<vmem>>, %arg2: memref<1x4xf32, #tpu.memory_space<vmem>>, %arg3: memref<4x1xf32, #tpu.memory_space<vmem>>, %arg4: memref<1x4x256xf32, #tpu.memory_space<vmem>>) attributes {dimension_semantics = [#tpu.dimension_semantics<parallel>], iteration_bounds = array<i64: 2>, scalar_prefetch = 0 : i64, scratch_operands = 0 : i64, tpu.core_type = #tpu.core_type<tc>, window_params = [{transform_indices = @transform_0, window_bounds = array<i64: 1, 4, 256>}, {pipeline_mode = #tpu.pipeline_mode<synchronous>, transform_indices = @transform_1, window_bounds = array<i64: 1, 4>}, {pipeline_mode = #tpu.pipeline_mode<synchronous>, transform_indices = @transform_2, window_bounds = array<i64: 4, 1>}, {transform_indices = @transform_3, window_bounds = array<i64: 1, 4, 256>}]} {
    %c0 = arith.constant 0 : index
    %c0_0 = arith.constant 0 : index
    %c0_1 = arith.constant 0 : index
    %0 = vector.load %arg1[%c0, %c0_0, %c0_1] : memref<1x4x256xf32, #tpu.memory_space<vmem>>, vector<1x4x256xf32>
    %1 = vector.shape_cast %0 : vector<1x4x256xf32> to vector<4x256xf32>
    %cst = arith.constant dense<0.000000e+00> : vector<4xf32>
    %2 = vector.multi_reduction <add>, %1, %cst [1] : vector<4x256xf32> to vector<4xf32>
    %3 = vector.shape_cast %2 : vector<4xf32> to vector<4x1xf32>
    %cst_2 = arith.constant 3.906250e-03 : f32
    %4 = vector.broadcast %cst_2 : f32 to vector<4x1xf32>
    %5 = arith.mulf %3, %4 : vector<4x1xf32>
    %c0_3 = arith.constant 0 : index
    %c0_4 = arith.constant 0 : index
    %6 = vector.load %arg2[%c0_3, %c0_4] : memref<1x4xf32, #tpu.memory_space<vmem>>, vector<1x4xf32>
    %c0_5 = arith.constant 0 : index
    %c0_6 = arith.constant 0 : index
    %7 = vector.load %arg3[%c0_5, %c0_6] : memref<4x1xf32, #tpu.memory_space<vmem>>, vector<4x1xf32>
    %cst_7 = arith.constant dense<0.000000e+00> : vector<1x1xf32>
    %8 = tpu.matmul %6, %5, %cst_7 {dimension_numbers = #tpu.dot_dimension_numbers<[1], [0], [0], [1], [0, 0, 1, 1], [], []>} : vector<1x4xf32>, vector<4x1xf32>, vector<1x1xf32> -> vector<1x1xf32>
    %cst_8 = arith.constant 0.000000e+00 : f32
    %9 = vector.broadcast %cst_8 : f32 to vector<1x1xf32>
    %10 = arith.maximumf %8, %9 : vector<1x1xf32>
    %cst_9 = arith.constant dense<0.000000e+00> : vector<4x1xf32>
    %11 = tpu.matmul %7, %10, %cst_9 {dimension_numbers = #tpu.dot_dimension_numbers<[1], [0], [0], [1], [0, 0, 1, 1], [], []>} : vector<4x1xf32>, vector<1x1xf32>, vector<4x1xf32> -> vector<4x1xf32>
    %12 = arith.negf %11 : vector<4x1xf32>
    %13 = math.exp %12 : vector<4x1xf32>
    %cst_10 = arith.constant 1.000000e+00 : f32
    %14 = vector.broadcast %cst_10 : f32 to vector<4x1xf32>
    %15 = arith.addf %14, %13 : vector<4x1xf32>
    %16 = arith.divf %14, %15 : vector<4x1xf32>
    %c0_11 = arith.constant 0 : index
    %c0_12 = arith.constant 0 : index
    %c0_13 = arith.constant 0 : index
    %17 = vector.load %arg1[%c0_11, %c0_12, %c0_13] : memref<1x4x256xf32, #tpu.memory_space<vmem>>, vector<1x4x256xf32>
    %18 = vector.shape_cast %17 : vector<1x4x256xf32> to vector<4x256xf32>
    %19 = vector.broadcast %16 : vector<4x1xf32> to vector<4x256xf32>
    %20 = arith.mulf %18, %19 : vector<4x256xf32>
    %c0_14 = arith.constant 0 : index
    %c0_15 = arith.constant 0 : index
    %c0_16 = arith.constant 0 : index
    %21 = vector.load %arg4[%c0_14, %c0_15, %c0_16] : memref<1x4x256xf32, #tpu.memory_space<vmem>>, vector<1x4x256xf32>
    %22 = vector.shape_cast %21 : vector<1x4x256xf32> to vector<4x256xf32>
    %23 = vector.shape_cast %20 : vector<4x256xf32> to vector<1x4x256xf32>
    tpu.vector_store %arg4[%c0_14, %c0_15, %c0_16], %23 {strides = array<i32>} : memref<1x4x256xf32, #tpu.memory_space<vmem>>, vector<1x4x256xf32>,
    return
  }
  func.func @transform_0(%arg0: i32) -> (i32, i32, i32) {
    %c0_i32 = arith.constant 0 : i32
    %c0_i32_0 = arith.constant 0 : i32
    %c0_i32_1 = arith.constant 0 : i32
    return %arg0, %c0_i32, %c0_i32_0 : i32, i32, i32
  }
  func.func @transform_1(%arg0: i32) -> (i32, i32) {
    %c0_i32 = arith.constant 0 : i32
    %c0_i32_0 = arith.constant 0 : i32
    %c0_i32_1 = arith.constant 0 : i32
    return %c0_i32, %c0_i32_0 : i32, i32
  }
  func.func @transform_2(%arg0: i32) -> (i32, i32) {
    %c0_i32 = arith.constant 0 : i32
    %c0_i32_0 = arith.constant 0 : i32
    %c0_i32_1 = arith.constant 0 : i32
    return %c0_i32, %c0_i32_0 : i32, i32
  }
  func.func @transform_3(%arg0: i32) -> (i32, i32, i32) {
    %c0_i32 = arith.constant 0 : i32
    %c0_i32_0 = arith.constant 0 : i32
    %c0_i32_1 = arith.constant 0 : i32
    return %arg0, %c0_i32, %c0_i32_0 : i32, i32, i32
  }
}

</mosaic_0001>

<llo_original>
// kernel: tpu_custom_call.1
$region0: #{tpu_custom_call.1}
  #allocation0 [shape = 'u32[]', space=smem, size = 0x4, offset = 0x4, fixed_abs, tag = 'smem constant byte address 0x4 - core index']
  #allocation1 [shape = 'u32[144,128]{1,0:T(1,128)}', space=vmem, size = 0x12000, scoped, tag = 'internal scratch']
  %s0 = inlined_call_operand.hbm [shape: f32[2,4,256], index: 0, kind: input, shape index: {}]
  %s1 = inlined_call_operand.vmem [shape: f32[1,4], index: 1, kind: input, shape index: {}]
  %s2 = inlined_call_operand.vmem [shape: f32[4,1], index: 2, kind: input, shape index: {}]
  %s3 = inlined_call_operand.hbm [shape: f32[2,4,256], index: 3, kind: output, shape index: {}]
  %s4 = sld [smem:[#allocation0]]
  $region49: #{tpu_custom_call.1} parent=0
    _
  %s6 = ssub.s32 1, %s4
  %s7 = scalar_select 0, %s6, %s4
  $region1: #{tpu_custom_call.1} parent=0
    #allocation2 [shape = 'u8[8192]{0}', space=vmem, size = 0x2000, scoped, tag = 'input window, operand 0']
    #allocation3 [shape = 's32[2]{0}', space=sflag, size = 0x8, scoped, tag = 'scoped memory for tpu_custom_call.1']
    #allocation4 [shape = 's32[2]{0}', space=sflag, size = 0x8, scoped, tag = 'scoped memory for tpu_custom_call.1']
    #allocation5 [shape = 'u8[8192]{0}', space=vmem, size = 0x2000, scoped, tag = 'output window, operand 0']
    %8 = vsyncpa [#allocation3], 0
    %s9 = scalar_lea.sflag [#allocation3], 1
    %10 = vsyncpa %s9, 0
    %11 = vsyncpa [#allocation4], 0
    %s12 = scalar_lea.sflag [#allocation4], 1
    %13 = vsyncpa %s12, 0
    loop: start=0, step=1, limit=4
    $region2: #{tpu_custom_call.1} parent=1 // loop_pre_header
      _
    $region3: #{tpu_custom_call.1} parent=1 // loop_header
      %s15 = sphi 0, %s19
      %p16 = scmp.ge.s32.totalorder %s15, 4
      %s25 = sphi 0, %s27
      %s28 = sphi 0, %s25
      %s29 = sphi 0, %s28
      %s45 = sphi 0, %s29
      %s49 = sphi 0, %s49
      %s51 = sphi 0, %s49
      %s52 = sphi 0, %s51
      %s66 = sphi 0, %s52
      %s70 = sphi 0, %s70
      %s72 = sphi 0, %s70
      %s73 = sphi 0, %s72
      %s87 = sphi 0, %s73
      %s93 = sphi 0, %s95
      %s96 = sphi 0, %s93
      %s97 = sphi 0, %s96
      %s113 = sphi 0, %s97
    $region4: #{tpu_custom_call.1} parent=1 // loop_header_branch
      %18 = sbr.rel (%p16) target = $region8
    $region5: #{tpu_custom_call.1} parent=1 // loop_body
      %s20 = ssub.s32 %s15, 1
      %s21 = ssub.s32 %s15, 2
      %s22 = sadd.s32 %s15, 1
      %s23 = ssub.s32 %s15, %s22
      %p24 = scmp.eq.s32.totalorder %s23, 0
      %s26 = sadd.s32 %s25, 1
      %s27 = scalar_select %p24, %s25, %s26
      %p30 = pneg %p24
      %p31 = scmp.eq.s32.totalorder %s15, 1
      %p32 = por %p30, %p31
      %p33 = scmp.ne.s32.totalorder %s25, %s28
      %p34 = scmp.eq.s32.totalorder %s15, 0
      %p35 = por %p33, %p34
      %p36 = scmp.ne.s32.totalorder %s25, %s28
      %p37 = scmp.eq.s32.totalorder %s20, 1
      %p38 = por %p36, %p37
      %p39 = scmp.ne.s32.totalorder %s28, %s29
      %p40 = scmp.eq.s32.totalorder %s20, 0
      %p41 = por %p39, %p40
      %p42 = scmp.ne.s32.totalorder %s28, %s29
      %p43 = scmp.eq.s32.totalorder %s21, 1
      %p44 = por %p42, %p43
      %p46 = scmp.ne.s32.totalorder %s29, %s45
      %p47 = scmp.eq.s32.totalorder %s21, 0
      %p48 = por %p46, %p47
      %s50 = sadd.s32 %s49, 1
      %p53 = scmp.eq.s32.totalorder %s15, 1
      %p54 = scmp.ne.s32.totalorder %s49, %s51
      %p55 = scmp.eq.s32.totalorder %s15, 0
      %p56 = por %p54, %p55
      %p57 = scmp.ne.s32.totalorder %s49, %s51
      %p58 = scmp.eq.s32.totalorder %s20, 1
      %p59 = por %p57, %p58
      %p60 = scmp.ne.s32.totalorder %s51, %s52
      %p61 = scmp.eq.s32.totalorder %s20, 0
      %p62 = por %p60, %p61
      %p63 = scmp.ne.s32.totalorder %s51, %s52
      %p64 = scmp.eq.s32.totalorder %s21, 1
      %p65 = por %p63, %p64
      %p67 = scmp.ne.s32.totalorder %s52, %s66
      %p68 = scmp.eq.s32.totalorder %s21, 0
      %p69 = por %p67, %p68
      %s71 = sadd.s32 %s70, 1
      %p74 = scmp.eq.s32.totalorder %s15, 1
      %p75 = scmp.ne.s32.totalorder %s70, %s72
      %p76 = scmp.eq.s32.totalorder %s15, 0
      %p77 = por %p75, %p76
      %p78 = scmp.ne.s32.totalorder %s70, %s72
      %p79 = scmp.eq.s32.totalorder %s20, 1
      %p80 = por %p78, %p79
      %p81 = scmp.ne.s32.totalorder %s72, %s73
      %p82 = scmp.eq.s32.totalorder %s20, 0
      %p83 = por %p81, %p82
      %p84 = scmp.ne.s32.totalorder %s72, %s73
      %p85 = scmp.eq.s32.totalorder %s21, 1
      %p86 = por %p84, %p85
      %p88 = scmp.ne.s32.totalorder %s73, %s87
      %p89 = scmp.eq.s32.totalorder %s21, 0
      %p90 = por %p88, %p89
      %s91 = ssub.s32 %s15, %s22
      %p92 = scmp.eq.s32.totalorder %s91, 0
      %s94 = sadd.s32 %s93, 1
      %s95 = scalar_select %p92, %s93, %s94
      %p98 = pneg %p92
      %p99 = scmp.eq.s32.totalorder %s15, 1
      %p100 = por %p98, %p99
      %p101 = scmp.ne.s32.totalorder %s93, %s96
      %p102 = scmp.eq.s32.totalorder %s15, 0
      %p103 = por %p101, %p102
      %p104 = scmp.ne.s32.totalorder %s93, %s96
      %p105 = scmp.eq.s32.totalorder %s20, 1
      %p106 = por %p104, %p105
      %p107 = scmp.ne.s32.totalorder %s96, %s97
      %p108 = scmp.eq.s32.totalorder %s20, 0
      %p109 = por %p107, %p108
      %p110 = scmp.ne.s32.totalorder %s96, %s97
      %p111 = scmp.eq.s32.totalorder %s21, 1
      %p112 = por %p110, %p111
      %p114 = scmp.ne.s32.totalorder %s97, %s113
      %p115 = scmp.eq.s32.totalorder %s21, 0
      %p116 = por %p114, %p115
      %p117 = scmp.le.s32.totalorder 1, %s15
      %p118 = scmp.lt.s32.totalorder %s15, 3
      %p119 = pnand %p117, %p118
      %p120 = pneg %p119
      // Predicated region
      $region9: #{tpu_custom_call.1} parent=5 // pred_check
        _
      $region10: #{tpu_custom_call.1} parent=5 // pred_check_branch
        %122 = sbr.rel (%p119) target = $region12
      $region11: #{tpu_custom_call.1} parent=5 // pred_region
        %s123 = ssub.s32 %s15, 1
        // Predicated region
        $region13: #{tpu_custom_call.1} parent=11 // pred_check
          %p124 = pneg %p62
        $region14: #{tpu_custom_call.1} parent=11 // pred_check_branch
          %126 = sbr.rel (%p124) target = $region16
        $region15: #{tpu_custom_call.1} parent=11 // pred_region
          _
        $region16: #{tpu_custom_call.1} parent=11 // pred_fallthru
          _
        // Predicated region
        $region17: #{tpu_custom_call.1} parent=11 // pred_check
          %p127 = pneg %p83
        $region18: #{tpu_custom_call.1} parent=11 // pred_check_branch
          %129 = sbr.rel (%p127) target = $region20
        $region19: #{tpu_custom_call.1} parent=11 // pred_region
          _
        $region20: #{tpu_custom_call.1} parent=11 // pred_fallthru
          _
      $region12: #{tpu_custom_call.1} parent=5 // pred_fallthru
        _
      %p130 = scmp.lt.s32.totalorder %s15, 2
      // Predicated region
      $region21: #{tpu_custom_call.1} parent=5 // pred_check
        %p131 = pneg %p130
      $region22: #{tpu_custom_call.1} parent=5 // pred_check_branch
        %133 = sbr.rel (%p131) target = $region24
      $region23: #{tpu_custom_call.1} parent=5 // pred_region
        // Predicated region
        $region25: #{tpu_custom_call.1} parent=23 // pred_check
          %p134 = pneg %p35
        $region26: #{tpu_custom_call.1} parent=23 // pred_check_branch
          %136 = sbr.rel (%p134) target = $region28
        $region27: #{tpu_custom_call.1} parent=23 // pred_region
          %s137 = sand.u32 %s25, 1
          %s138 = scalar_lea.sflag [#allocation3], %s137
          %s139 = sand.u32 %s25, 1
          %s140 = smul.addr %s139, 8
          %s141 = scalar_lea.vmem [#allocation2], %s140
          %s143 = ssub.s32 128, 128
          %144 = vsyncadd %s138, %s143
          %s145 = smul.addr %s15, 2
          %s146 = smul.addr %s145, 64
          %s147 = scalar_lea.hbm %s0, %s146
          %s149 = sshll.u32 %s141, 4
          %s150 = int_to_ptr.vmem [resolvable:$true] %s149
          %152 = dma.hbm_to_vmem [thread:$0]  %s147, 128, %s150, %s138
        $region28: #{tpu_custom_call.1} parent=23 // pred_fallthru
          _
      $region24: #{tpu_custom_call.1} parent=5 // pred_fallthru
        _
      %p153 = scmp.le.s32.totalorder 1, %s15
      %p154 = scmp.lt.s32.totalorder %s15, 3
      %p155 = pnand %p153, %p154
      %p156 = pneg %p155
      // Predicated region
      $region29: #{tpu_custom_call.1} parent=5 // pred_check
        _
      $region30: #{tpu_custom_call.1} parent=5 // pred_check_branch
        %158 = sbr.rel (%p155) target = $region32
      $region31: #{tpu_custom_call.1} parent=5 // pred_region
        %s159 = ssub.s32 %s15, 1
        %s160 = sand.u32 %s28, 1
        %s161 = scalar_lea.sflag [#allocation3], %s160
        %s162 = sand.u32 %s28, 1
        %s163 = smul.addr %s162, 8
        %s164 = scalar_lea.vmem [#allocation2], %s163
        // Predicated region
        $region33: #{tpu_custom_call.1} parent=31 // pred_check
          %p165 = pneg %p41
        $region34: #{tpu_custom_call.1} parent=31 // pred_check_branch
          %167 = sbr.rel (%p165) target = $region36
        $region35: #{tpu_custom_call.1} parent=31 // pred_region
          %168 = dma.done %s161, 128
        $region36: #{tpu_custom_call.1} parent=31 // pred_fallthru
          _
        %s169 = sand.u32 %s28, 1
        %s170 = scalar_lea.sflag [#allocation3], %s169
        %s171 = sand.u32 %s28, 1
        %s172 = smul.addr %s171, 8
        %s173 = scalar_lea.vmem [#allocation2], %s172
        %p174 = pneg %p41
        %p175 = pneg %p38
        %p176 = pneg %p62
        %p177 = pneg %p59
        %p178 = pneg %p83
        %p179 = pneg %p80
        %p180 = pneg %p109
        %p181 = pneg %p106
        %s182 = sand.u32 %s96, 1
        %s183 = scalar_lea.sflag [#allocation4], %s182
        %s184 = sand.u32 %s96, 1
        %s185 = smul.addr %s184, 8
        %s186 = scalar_lea.vmem [#allocation5], %s185
        %v187 = vld [vmem:[%s164] sm:$0xff]
        %v189 = vcombine.high %v187, %v187
        %vm191 = vcmask 1043456
        %v192 = vsel %vm191, %v187, 0.0
        %v193 = vsel %vm191, %v189, 0.0
        %v194 = vadd.f32 %v192, %v193
        %195 = vadd.xlane.f32.xlu0 %v194
        %v196 = vpop.xlane.xlu0 %195
        %v197 = vmul.f32 %v196, 0.00390625
        %v198 = vld [vmem:[%s1] sm:$0x1]
        %v199 = vld [vmem:[%s2] sm:$0xf]
        %vm200 = vcmask 31744
        %v202 = vsel %vm200, %v198, 0
        %v205 = vsel %vm191, %v197, 0
        %207 = vmatprep.subr.mxu0 0.0
        %208 = vmatpush1.msra.mxu0 %v205
        %209 = vmatprep.subr.mxu0 0.0
        %210 = vmatpush1.msra.mxu0 0.0
        %211 = vmatprep.subr.mxu0 0.0
        %212 = vmatpush1.msra.mxu0 0.0
        %213 = vmatprep.subr.mxu0 0.0
        %214 = vmatpush1.msra.mxu0 0.0
        %215 = vmatprep.subr.mxu0 0.0
        %216 = vmatpush1.msra.mxu0 0.0
        %217 = vmatprep.subr.mxu0 0.0
        %218 = vmatpush1.msra.mxu0 0.0
        %219 = vmatprep.subr.mxu0 0.0
        %220 = vmatpush1.msra.mxu0 0.0
        %221 = vmatprep.subr.mxu0 0.0
        %222 = vmatpush1.msra.mxu0 0.0
        %223 = vmatprep.subr.mxu0 0.0
        %224 = vmatpush1.msra.mxu0 0.0
        %225 = vmatprep.subr.mxu0 0.0
        %226 = vmatpush1.msra.mxu0 0.0
        %227 = vmatprep.subr.mxu0 0.0
        %228 = vmatpush1.msra.mxu0 0.0
        %229 = vmatprep.subr.mxu0 0.0
        %230 = vmatpush1.msra.mxu0 0.0
        %231 = vmatprep.subr.mxu0 0.0
        %232 = vmatpush1.msra.mxu0 0.0
        %233 = vmatprep.subr.mxu0 0.0
        %234 = vmatpush1.msra.mxu0 0.0
        %235 = vmatprep.subr.mxu0 0.0
        %236 = vmatpush1.msra.mxu0 0.0
        %237 = vmatprep.subr.mxu0 0.0
        %238 = vmatpush1.msra.mxu0 0.0
        %239 = vmatprep.subr.mxu0 0.0
        %240 = vmatpush1.msra.mxu0 0.0
        %241 = vmatprep.subr.mxu0 0.0
        %242 = vmatpush1.msra.mxu0 0.0
        %243 = vmatprep.subr.mxu0 0.0
        %244 = vmatpush1.msra.mxu0 0.0
        %245 = vmatprep.subr.mxu0 0.0
        %246 = vmatpush1.msra.mxu0 0.0
        %247 = vmatprep.subr.mxu0 0.0
        %248 = vmatpush1.msra.mxu0 0.0
        %249 = vmatprep.subr.mxu0 0.0
        %250 = vmatpush1.msra.mxu0 0.0
        %251 = vmatprep.subr.mxu0 0.0
        %252 = vmatpush1.msra.mxu0 0.0
        %253 = vmatprep.subr.mxu0 0.0
        %254 = vmatpush1.msra.mxu0 0.0
        %255 = vmatprep.subr.mxu0 0.0
        %256 = vmatpush1.msra.mxu0 0.0
        %257 = vmatprep.subr.mxu0 0.0
        %258 = vmatpush1.msra.mxu0 0.0
        %259 = vmatprep.subr.mxu0 0.0
        %260 = vmatpush1.msra.mxu0 0.0
        %261 = vmatprep.subr.mxu0 0.0
        %262 = vmatpush1.msra.mxu0 0.0
        %263 = vmatprep.subr.mxu0 0.0
        %264 = vmatpush1.msra.mxu0 0.0
        %265 = vmatprep.subr.mxu0 0.0
        %266 = vmatpush1.msra.mxu0 0.0
        %267 = vmatprep.subr.mxu0 0.0
        %268 = vmatpush1.msra.mxu0 0.0
        %269 = vmatprep.subr.mxu0 0.0
        %270 = vmatpush1.msra.mxu0 0.0
        %271 = vmatprep.mubr.f32.mxu0 0.0
        %272 = vmatmul.mubr.f32.gmra.mrb[0].mxu0 %v202
        %v273 = vpop.f32.mrb[0].mxu0
        %v274 = vadd.f32 0.0, %v273
        %v275 = vpop.f32.mrb[0].mxu0
        %276 = vdwg.mxu0
        %v277 = vmax.f32 %v274, 0.0
        %vm278 = vcmask 7168
        %v280 = vsel %vm278, %v199, 0
        %vm282 = vcmask 1040384
        %v284 = vsel %vm282, %v277, 0
        %286 = vmatprep.subr.mxu0 0.0
        %287 = vmatpush1.msra.mxu0 %v284
        %288 = vmatprep.subr.mxu0 0.0
        %289 = vmatpush1.msra.mxu0 0.0
        %290 = vmatprep.subr.mxu0 0.0
        %291 = vmatpush1.msra.mxu0 0.0
        %292 = vmatprep.subr.mxu0 0.0
        %293 = vmatpush1.msra.mxu0 0.0
        %294 = vmatprep.subr.mxu0 0.0
        %295 = vmatpush1.msra.mxu0 0.0
        %296 = vmatprep.subr.mxu0 0.0
        %297 = vmatpush1.msra.mxu0 0.0
        %298 = vmatprep.subr.mxu0 0.0
        %299 = vmatpush1.msra.mxu0 0.0
        %300 = vmatprep.subr.mxu0 0.0
        %301 = vmatpush1.msra.mxu0 0.0
        %302 = vmatprep.subr.mxu0 0.0
        %303 = vmatpush1.msra.mxu0 0.0
        %304 = vmatprep.subr.mxu0 0.0
        %305 = vmatpush1.msra.mxu0 0.0
        %306 = vmatprep.subr.mxu0 0.0
        %307 = vmatpush1.msra.mxu0 0.0
        %308 = vmatprep.subr.mxu0 0.0
        %309 = vmatpush1.msra.mxu0 0.0
        %310 = vmatprep.subr.mxu0 0.0
        %311 = vmatpush1.msra.mxu0 0.0
        %312 = vmatprep.subr.mxu0 0.0
        %313 = vmatpush1.msra.mxu0 0.0
        %314 = vmatprep.subr.mxu0 0.0
        %315 = vmatpush1.msra.mxu0 0.0
        %316 = vmatprep.subr.mxu0 0.0
        %317 = vmatpush1.msra.mxu0 0.0
        %318 = vmatprep.subr.mxu0 0.0
        %319 = vmatpush1.msra.mxu0 0.0
        %320 = vmatprep.subr.mxu0 0.0
        %321 = vmatpush1.msra.mxu0 0.0
        %322 = vmatprep.subr.mxu0 0.0
        %323 = vmatpush1.msra.mxu0 0.0
        %324 = vmatprep.subr.mxu0 0.0
        %325 = vmatpush1.msra.mxu0 0.0
        %326 = vmatprep.subr.mxu0 0.0
        %327 = vmatpush1.msra.mxu0 0.0
        %328 = vmatprep.subr.mxu0 0.0
        %329 = vmatpush1.msra.mxu0 0.0
        %330 = vmatprep.subr.mxu0 0.0
        %331 = vmatpush1.msra.mxu0 0.0
        %332 = vmatprep.subr.mxu0 0.0
        %333 = vmatpush1.msra.mxu0 0.0
        %334 = vmatprep.subr.mxu0 0.0
        %335 = vmatpush1.msra.mxu0 0.0
        %336 = vmatprep.subr.mxu0 0.0
        %337 = vmatpush1.msra.mxu0 0.0
        %338 = vmatprep.subr.mxu0 0.0
        %339 = vmatpush1.msra.mxu0 0.0
        %340 = vmatprep.subr.mxu0 0.0
        %341 = vmatpush1.msra.mxu0 0.0
        %342 = vmatprep.subr.mxu0 0.0
        %343 = vmatpush1.msra.mxu0 0.0
        %344 = vmatprep.subr.mxu0 0.0
        %345 = vmatpush1.msra.mxu0 0.0
        %346 = vmatprep.subr.mxu0 0.0
        %347 = vmatpush1.msra.mxu0 0.0
        %348 = vmatprep.subr.mxu0 0.0
        %349 = vmatpush1.msra.mxu0 0.0
        %350 = vmatprep.mubr.f32.mxu0 0.0
        %351 = vmatmul.mubr.f32.gmra.mrb[0].mxu0 %v280
        %v352 = vpop.f32.mrb[0].mxu0
        %v353 = vadd.f32 0.0, %v352
        %v354 = vpop.f32.mrb[0].mxu0
        %355 = vdwg.mxu0
        %v356 = vxor.u32 %v353, 2147483648
        %v357 = vmul.f32 %v356, 1.442695
        %v358 = vpow.pop %v357
        %v359 = vadd.f32 %v358, 1.0
        %v360 = vrcp.pop %v359
        %v361 = vmul.f32 1.0, %v360
        %363 = vset.pattern.permute.xlu0 0
        %364 = vperm.xlu0 %363, %v361
        %v365 = vpop.permute.xlu0 %364
        %v367 = vunpack.c.l.s4 839922192
        %v368 = vunpack.c.0.s8 %v367
        %v369 = vlaneseq
        %v370 = vshrl.u32 %v369, 7
        %v371 = vsub.s32 %v368, %v370
        %v372 = vrot.slane %v365, %v371
        %v374 = vmul.f32 %v187, %v372
        %375 = vst [vmem:[%s186] sm:$0xff] %v374
        %s376 = sand.u32 %s96, 1
        %s377 = scalar_lea.sflag [#allocation4], %s376
        %s378 = sand.u32 %s96, 1
        %s379 = smul.addr %s378, 8
        %s380 = scalar_lea.vmem [#allocation5], %s379
        // Predicated region
        $region37: #{tpu_custom_call.1} parent=31 // pred_check
          %p381 = pneg %p106
        $region38: #{tpu_custom_call.1} parent=31 // pred_check_branch
          %383 = sbr.rel (%p381) target = $region40
        $region39: #{tpu_custom_call.1} parent=31 // pred_region
          %s385 = ssub.s32 128, 128
          %386 = vsyncadd %s377, %s385
          %s387 = smul.addr %s20, 2
          %s388 = smul.addr %s387, 64
          %s389 = scalar_lea.hbm %s3, %s388
          %s391 = sshll.u32 %s380, 4
          %s392 = int_to_ptr.vmem [resolvable:$true] %s391
          %394 = dma.vmem_to_hbm [thread:$0]  %s392, 128, %s389, %s377
        $region40: #{tpu_custom_call.1} parent=31 // pred_fallthru
          _
      $region32: #{tpu_custom_call.1} parent=5 // pred_fallthru
        _
      %p395 = scmp.le.s32.totalorder 2, %s15
      // Predicated region
      $region41: #{tpu_custom_call.1} parent=5 // pred_check
        %p396 = pneg %p395
      $region42: #{tpu_custom_call.1} parent=5 // pred_check_branch
        %398 = sbr.rel (%p396) target = $region44
      $region43: #{tpu_custom_call.1} parent=5 // pred_region
        %s399 = ssub.s32 %s15, 2
        // Predicated region
        $region45: #{tpu_custom_call.1} parent=43 // pred_check
          %p400 = pneg %p112
        $region46: #{tpu_custom_call.1} parent=43 // pred_check_branch
          %402 = sbr.rel (%p400) target = $region48
        $region47: #{tpu_custom_call.1} parent=43 // pred_region
          %s403 = sand.u32 %s97, 1
          %s404 = scalar_lea.sflag [#allocation4], %s403
          %s405 = sand.u32 %s97, 1
          %s406 = smul.addr %s405, 8
          %s407 = scalar_lea.vmem [#allocation5], %s406
          %408 = dma.done %s404, 128
        $region48: #{tpu_custom_call.1} parent=43 // pred_fallthru
          _
      $region44: #{tpu_custom_call.1} parent=5 // pred_fallthru
        _
    $region6: #{tpu_custom_call.1} parent=1 // loop_footer
      %s19 = sadd.s32 1, %s15
    $region7: #{tpu_custom_call.1} parent=1 // loop_footer_branch
      %14 = sbr.rel target = $region3
    $region8: #{tpu_custom_call.1} parent=1 // loop_exit
      _
    %409 = vsyncpa [#allocation3], 1
    %s410 = scalar_lea.sflag [#allocation3], 1
    %411 = vsyncpa %s410, 1
    %412 = vsyncpa [#allocation4], 1
    %s413 = scalar_lea.sflag [#allocation4], 1
    %414 = vsyncpa %s413, 1

</llo_original>
